<compile_context>
chip_gen: v7x
topology: tpu7x:2x2x1
jax: 0.10.0
libtpu: 0.0.40
codegen_flags: <defaults>
</compile_context>

<pallas_src>
import jax
import jax.numpy as jnp
from jax.experimental import pallas as pl
from jax.experimental.pallas import tpu as pltpu


def _hetero_vertex_conv_kernel(a_ref, x_ref, m_ref, w_ref, out_ref):
    """1-D row grid.

    a_ref  : [TM, N]      int8  adjacency row tile (dest-major, streamed)
    x_ref  : [N, 4F]      bf16  fused [ns | nv_x | nv_y | nv_z] features (resident)
    m_ref  : [T, TM, 1]   bf16  per-type 0/1 destination-row masks for this tile
    w_ref  : [T, 4F, 4F]  bf16  per-type block-diag(Ws, Wv, Wv, Wv) weights
                                 (mean-over-valid-types scale pre-folded in)
    out_ref: [TM, 4F]     f32   fused output slab
    """
    # Type-independent aggregation over in-edges for this row tile: one big MXU matmul.
    # int8 -> f32 -> bf16 widen is a couple of VPU casts per vreg (the two-step path is the
    # universally supported one) and is free under the HBM-bound adjacency stream.
    a_bf16 = a_ref[...].astype(jnp.float32).astype(jnp.bfloat16)
    agg = jnp.dot(a_bf16, x_ref[...], preferred_element_type=jnp.float32)
    agg_bf16 = agg.astype(jnp.bfloat16)          # cast once, reused by every type

    # Small unrolled loop over node types (T is tiny): pure 0/1 row mask + one
    # block-diagonal [4F, 4F] MXU matmul per type, accumulated in f32 registers.
    num_types = m_ref.shape[0]
    acc = None
    for t in range(num_types):                   # static Python unroll
        contrib = jnp.dot(agg_bf16 * m_ref[t], w_ref[t],
                          preferred_element_type=jnp.float32)
        acc = contrib if acc is None else acc + contrib
    out_ref[...] = acc                           # written exactly once per row tile


def disted_hetero_vertex_conv(adj, ns, nv, atomic_numbers, type_anums, ws, wv, *,
                              tile_m=None):
    """adj[i, u] = 1 iff edge u -> i (dest-major, 0/1). ns: [N, F], nv: [3, N, F],
    atomic_numbers: [N] int, type_anums: [T] int, ws/wv: [T, F, F].
    Returns (vrst [3, N, F] f32, srst [N, F] f32)."""
    N, F = ns.shape
    T = int(type_anums.shape[0])
    C = 4 * F
    assert T >= 1

    if tile_m is None:
        tile_m = min(N, 128)
    assert N % tile_m == 0, "row tile must divide N"
    assert tile_m % 32 == 0, "row tile must be 32-aligned (int8 sublane packing)"

    # ---- host glue (traced jnp; cheap O(N*F + T*F^2)) -------------------------------------
    # Fused RHS [ns | nv_x | nv_y | nv_z] -> [N, 4F], bf16 for the MXU.
    x = jnp.concatenate([ns, nv[0], nv[1], nv[2]], axis=1).astype(jnp.bfloat16)
    adj_i8 = adj.astype(jnp.int8)                 # 0/1 adjacency exact in int8, halves HBM bytes

    # Per-type destination mask (pure 0/1), edge-existence check, mean-over-valid-types scale.
    type_mask = (atomic_numbers[None, :] == type_anums[:, None])                   # [T, N] bool
    in_deg = jnp.sum(adj, axis=1)                                                  # [N]
    edges_per_type = type_mask.astype(jnp.float32) @ in_deg                        # [T]
    valid = (edges_per_type > 0).astype(jnp.float32)
    n_valid = jnp.maximum(jnp.sum(valid), 1.0)
    masks = type_mask.astype(jnp.bfloat16)[:, :, None]                             # [T, N, 1]

    # Block-diagonal fused weights diag(Ws, Wv, Wv, Wv), mean scale folded in: [T, 4F, 4F].
    z = jnp.zeros((T, F, F), ws.dtype)
    wcat = jnp.concatenate([
        jnp.concatenate([ws, z, z, z], axis=2),
        jnp.concatenate([z, wv, z, z], axis=2),
        jnp.concatenate([z, z, wv, z], axis=2),
        jnp.concatenate([z, z, z, wv], axis=2),
    ], axis=1)
    wcat = (wcat * (valid / n_valid)[:, None, None]).astype(jnp.bfloat16)

    # Explicit VMEM budget: double-buffered A/out, resident X/masks/weights, temp headroom.
    est_bytes = (2 * tile_m * N                    # A int8 (double-buffered)
                 + 2 * N * C * 2                   # fused features bf16
                 + 2 * T * tile_m * 128 * 2        # masks (lane-padded)
                 + 2 * T * C * C * 2               # fused weights
                 + 2 * tile_m * C * 4              # output f32
                 + 6 * tile_m * max(N, C) * 4)     # in-body temporaries (agg / casts)
    vmem_limit = int(min(96 * 2**20, max(16 * 2**20, 2 * est_bytes)))

    grid_spec = pltpu.PrefetchScalarGridSpec(
        num_scalar_prefetch=0,
        grid=(N // tile_m,),                                       # 1-D row grid
        in_specs=[
            pl.BlockSpec((tile_m, N), lambda r: (r, 0)),           # A row tile (streamed)
            pl.BlockSpec((N, C), lambda r: (0, 0)),                # fused features, resident
            pl.BlockSpec((T, tile_m, 1), lambda r: (0, r, 0)),     # per-type 0/1 row masks
            pl.BlockSpec((T, C, C), lambda r: (0, 0, 0)),          # per-type fused weights
        ],
        out_specs=pl.BlockSpec((tile_m, C), lambda r: (r, 0)),     # lane-dense [TM, 4F]
    )

    out = pl.pallas_call(
        _hetero_vertex_conv_kernel,
        out_shape=jax.ShapeDtypeStruct((N, C), jnp.float32),
        grid_spec=grid_spec,
        compiler_params=pltpu.CompilerParams(
            dimension_semantics=("parallel",),
            vmem_limit_bytes=vmem_limit),
    )(adj_i8, x, masks, wcat)

    srst = out[:, :F]
    vrst = out[:, F:].reshape(N, 3, F).transpose(1, 0, 2)          # [3, N, F]
    return vrst, srst


def _reference(adj, ns, nv, atomic_numbers, type_anums, ws, wv):
    """Plain-JAX f32 mirror of the PyTorch forward (skip edge-less types, mean over the rest)."""
    vrsts, srsts = [], []
    for ti in range(int(type_anums.shape[0])):
        mask = (atomic_numbers == type_anums[ti]).astype(jnp.float32)[:, None]   # [N, 1]
        a_t = adj * mask                                                          # in_subgraph
        if float(jnp.sum(a_t)) == 0.0:                                            # no edges
            continue
        agg_s = a_t @ ns
        srsts.append(agg_s @ ws[ti])
        agg_v = jnp.einsum("iu,duf->dif", a_t, nv)
        vrsts.append(jnp.einsum("dif,fg->dig", agg_v, wv[ti]))
    return jnp.stack(vrsts).mean(0), jnp.stack(srsts).mean(0)


if __name__ == "__main__":
    key = jax.random.PRNGKey(0)
    N, F, T = 128, 32, 3                                  # nodes, hidden features, node types
    type_anums = jnp.array([1, 6, 8], dtype=jnp.int32)    # e.g. H, C, O

    k_adj, k_ns, k_nv, k_ws, k_wv = jax.random.split(key, 5)

    # random directed graph as dense dest-major adjacency, no self loops
    adj = (jax.random.uniform(k_adj, (N, N)) < 0.1).astype(jnp.float32)
    adj = adj * (1.0 - jnp.eye(N, dtype=jnp.float32))

    ns = jax.random.normal(k_ns, (N, F), dtype=jnp.float32)
    nv = jax.random.normal(k_nv, (3, N, F), dtype=jnp.float32)

    # per-type "module" parameters (representative linear layers)
    ws = jax.random.normal(k_ws, (T, F, F), dtype=jnp.float32) * 0.1
    wv = jax.random.normal(k_wv, (T, F, F), dtype=jnp.float32) * 0.1

    # atomic numbers per node (round-robin over the T types)
    atomic_numbers = type_anums[jnp.arange(N) % T]

    vrst, srst = disted_hetero_vertex_conv(adj, ns, nv, atomic_numbers, type_anums,
                                           ws, wv, tile_m=64)
    jax.block_until_ready((vrst, srst))

    v_ref, s_ref = _reference(adj, ns, nv, atomic_numbers, type_anums, ws, wv)
    # bf16 operands with f32 accumulation -> loosened tolerance vs. the f32 reference.
    assert jnp.allclose(vrst, v_ref, atol=5e-2, rtol=5e-2), "vectorial output mismatch"
    assert jnp.allclose(srst, s_ref, atol=5e-2, rtol=5e-2), "scalar output mismatch"

    print("KERNEL_OK")
</pallas_src>

<mosaic_0001>
module attributes {stable_mosaic.version = 11 : i64} {
  func.func @_hetero_vertex_conv_kernel(%arg0: i32, %arg1: memref<64x128xi8, #tpu.memory_space<vmem>>, %arg2: memref<128x128xbf16, #tpu.memory_space<vmem>>, %arg3: memref<3x64x1xbf16, #tpu.memory_space<vmem>>, %arg4: memref<3x128x128xbf16, #tpu.memory_space<vmem>>, %arg5: memref<64x128xf32, #tpu.memory_space<vmem>>) attributes {dimension_semantics = [#tpu.dimension_semantics<parallel>], iteration_bounds = array<i64: 2>, scalar_prefetch = 0 : i64, scratch_operands = 0 : i64, tpu.core_type = #tpu.core_type<tc>, window_params = [{transform_indices = @transform_0, window_bounds = array<i64: 64, 128>}, {pipeline_mode = #tpu.pipeline_mode<synchronous>, transform_indices = @transform_1, window_bounds = array<i64: 128, 128>}, {transform_indices = @transform_2, window_bounds = array<i64: 3, 64, 1>}, {pipeline_mode = #tpu.pipeline_mode<synchronous>, transform_indices = @transform_3, window_bounds = array<i64: 3, 128, 128>}, {transform_indices = @transform_4, window_bounds = array<i64: 64, 128>}]} {
    %c0 = arith.constant 0 : index
    %c0_0 = arith.constant 0 : index
    %0 = vector.load %arg1[%c0, %c0_0] : memref<64x128xi8, #tpu.memory_space<vmem>>, vector<64x128xi8>
    %1 = arith.sitofp %0 : vector<64x128xi8> to vector<64x128xf32>
    %2 = arith.truncf %1 : vector<64x128xf32> to vector<64x128xbf16>
    %c0_1 = arith.constant 0 : index
    %c0_2 = arith.constant 0 : index
    %3 = vector.load %arg2[%c0_1, %c0_2] : memref<128x128xbf16, #tpu.memory_space<vmem>>, vector<128x128xbf16>
    %cst = arith.constant dense<0.000000e+00> : vector<64x128xf32>
    %4 = tpu.matmul %2, %3, %cst {dimension_numbers = #tpu.dot_dimension_numbers<[1], [0], [0], [1], [0, 0, 1, 1], [], []>} : vector<64x128xbf16>, vector<128x128xbf16>, vector<64x128xf32> -> vector<64x128xf32>
    %5 = arith.truncf %4 : vector<64x128xf32> to vector<64x128xbf16>
    %c0_3 = arith.constant 0 : index
    %c0_4 = arith.constant 0 : index
    %c0_5 = arith.constant 0 : index
    %6 = vector.load %arg3[%c0_3, %c0_4, %c0_5] : memref<3x64x1xbf16, #tpu.memory_space<vmem>>, vector<1x64x1xbf16>
    %7 = vector.shape_cast %6 : vector<1x64x1xbf16> to vector<64x1xbf16>
    %8 = vector.broadcast %7 : vector<64x1xbf16> to vector<64x128xbf16>
    %9 = arith.mulf %5, %8 : vector<64x128xbf16>
    %c0_6 = arith.constant 0 : index
    %c0_7 = arith.constant 0 : index
    %c0_8 = arith.constant 0 : index
    %10 = vector.load %arg4[%c0_6, %c0_7, %c0_8] : memref<3x128x128xbf16, #tpu.memory_space<vmem>>, vector<1x128x128xbf16>
    %11 = vector.shape_cast %10 : vector<1x128x128xbf16> to vector<128x128xbf16>
    %cst_9 = arith.constant dense<0.000000e+00> : vector<64x128xf32>
    %12 = tpu.matmul %9, %11, %cst_9 {dimension_numbers = #tpu.dot_dimension_numbers<[1], [0], [0], [1], [0, 0, 1, 1], [], []>} : vector<64x128xbf16>, vector<128x128xbf16>, vector<64x128xf32> -> vector<64x128xf32>
    %c1 = arith.constant 1 : index
    %c0_10 = arith.constant 0 : index
    %c0_11 = arith.constant 0 : index
    %13 = vector.load %arg3[%c1, %c0_10, %c0_11] : memref<3x64x1xbf16, #tpu.memory_space<vmem>>, vector<1x64x1xbf16>
    %14 = vector.shape_cast %13 : vector<1x64x1xbf16> to vector<64x1xbf16>
    %15 = vector.broadcast %14 : vector<64x1xbf16> to vector<64x128xbf16>
    %16 = arith.mulf %5, %15 : vector<64x128xbf16>
    %c1_12 = arith.constant 1 : index
    %c0_13 = arith.constant 0 : index
    %c0_14 = arith.constant 0 : index
    %17 = vector.load %arg4[%c1_12, %c0_13, %c0_14] : memref<3x128x128xbf16, #tpu.memory_space<vmem>>, vector<1x128x128xbf16>
    %18 = vector.shape_cast %17 : vector<1x128x128xbf16> to vector<128x128xbf16>
    %cst_15 = arith.constant dense<0.000000e+00> : vector<64x128xf32>
    %19 = tpu.matmul %16, %18, %cst_15 {dimension_numbers = #tpu.dot_dimension_numbers<[1], [0], [0], [1], [0, 0, 1, 1], [], []>} : vector<64x128xbf16>, vector<128x128xbf16>, vector<64x128xf32> -> vector<64x128xf32>
    %20 = arith.addf %12, %19 : vector<64x128xf32>
    %c2 = arith.constant 2 : index
    %c0_16 = arith.constant 0 : index
    %c0_17 = arith.constant 0 : index
    %21 = vector.load %arg3[%c2, %c0_16, %c0_17] : memref<3x64x1xbf16, #tpu.memory_space<vmem>>, vector<1x64x1xbf16>
    %22 = vector.shape_cast %21 : vector<1x64x1xbf16> to vector<64x1xbf16>
    %23 = vector.broadcast %22 : vector<64x1xbf16> to vector<64x128xbf16>
    %24 = arith.mulf %5, %23 : vector<64x128xbf16>
    %c2_18 = arith.constant 2 : index
    %c0_19 = arith.constant 0 : index
    %c0_20 = arith.constant 0 : index
    %25 = vector.load %arg4[%c2_18, %c0_19, %c0_20] : memref<3x128x128xbf16, #tpu.memory_space<vmem>>, vector<1x128x128xbf16>
    %26 = vector.shape_cast %25 : vector<1x128x128xbf16> to vector<128x128xbf16>
    %cst_21 = arith.constant dense<0.000000e+00> : vector<64x128xf32>
    %27 = tpu.matmul %24, %26, %cst_21 {dimension_numbers = #tpu.dot_dimension_numbers<[1], [0], [0], [1], [0, 0, 1, 1], [], []>} : vector<64x128xbf16>, vector<128x128xbf16>, vector<64x128xf32> -> vector<64x128xf32>
    %28 = arith.addf %20, %27 : vector<64x128xf32>
    %c0_22 = arith.constant 0 : index
    %c0_23 = arith.constant 0 : index
    %29 = vector.load %arg5[%c0_22, %c0_23] : memref<64x128xf32, #tpu.memory_space<vmem>>, vector<64x128xf32>
    tpu.vector_store %arg5[%c0_22, %c0_23], %28 {strides = array<i32>} : memref<64x128xf32, #tpu.memory_space<vmem>>, vector<64x128xf32>,
    return
  }
  func.func @transform_0(%arg0: i32) -> (i32, i32) {
    %c0_i32 = arith.constant 0 : i32
    %c0_i32_0 = arith.constant 0 : i32
    return %arg0, %c0_i32 : i32, i32
  }
  func.func @transform_1(%arg0: i32) -> (i32, i32) {
    %c0_i32 = arith.constant 0 : i32
    %c0_i32_0 = arith.constant 0 : i32
    %c0_i32_1 = arith.constant 0 : i32
    return %c0_i32, %c0_i32_0 : i32, i32
  }
  func.func @transform_2(%arg0: i32) -> (i32, i32, i32) {
    %c0_i32 = arith.constant 0 : i32
    %c0_i32_0 = arith.constant 0 : i32
    %c0_i32_1 = arith.constant 0 : i32
    return %c0_i32, %arg0, %c0_i32_0 : i32, i32, i32
  }
  func.func @transform_3(%arg0: i32) -> (i32, i32, i32) {
    %c0_i32 = arith.constant 0 : i32
    %c0_i32_0 = arith.constant 0 : i32
    %c0_i32_1 = arith.constant 0 : i32
    %c0_i32_2 = arith.constant 0 : i32
    return %c0_i32, %c0_i32_0, %c0_i32_1 : i32, i32, i32
  }
  func.func @transform_4(%arg0: i32) -> (i32, i32) {
    %c0_i32 = arith.constant 0 : i32
    %c0_i32_0 = arith.constant 0 : i32
    return %arg0, %c0_i32 : i32, i32
  }
}

</mosaic_0001>

<llo_original>
// kernel: tpu_custom_call.1
$region0: #{tpu_custom_call.1}
  #allocation0 [shape = 'u32[]', space=smem, size = 0x4, offset = 0x4, fixed_abs, tag = 'smem constant byte address 0x4 - core index']
  #allocation1 [shape = 'u32[144,128]{1,0:T(1,128)}', space=vmem, size = 0x12000, scoped, tag = 'internal scratch']
  %s0 = inlined_call_operand.hbm [shape: s8[128,128], index: 0, kind: input, shape index: {}]
  %s1 = inlined_call_operand.hbm [shape: bf16[128,128], index: 1, kind: input, shape index: {}]
  %s2 = inlined_call_operand.vmem [shape: bf16[3,128,1], index: 2, kind: input, shape index: {}]
  %s3 = inlined_call_operand.vmem [shape: bf16[3,128,128], index: 3, kind: input, shape index: {}]
  %s4 = inlined_call_operand.hbm [shape: f32[128,128], index: 4, kind: output, shape index: {}]
  %s5 = sld [smem:[#allocation0]]
  $region98: #{tpu_custom_call.1} parent=0
    _
  %s7 = ssub.s32 1, %s5
  %s8 = scalar_select 0, %s7, %s5
  $region1: #{tpu_custom_call.1} parent=0
    #allocation2 [shape = 'u8[16384]{0}', space=vmem, size = 0x4000, scoped, tag = 'input window, operand 0']
    #allocation3 [shape = 's32[2]{0}', space=sflag, size = 0x8, scoped, tag = 'scoped memory for tpu_custom_call.1']
    #allocation4 [shape = 's32[2]{0}', space=sflag, size = 0x8, scoped, tag = 'scoped memory for tpu_custom_call.1']
    #allocation5 [shape = 'u8[32768]{0}', space=vmem, size = 0x8000, scoped, tag = 'input window, operand 1, single buffered']
    #allocation6 [shape = 's32[1]{0}', space=sflag, size = 0x4, scoped, tag = 'scoped memory for tpu_custom_call.1']
    #allocation7 [shape = 'u8[98304]{0}', space=vmem, size = 0x18000, scoped, tag = 'input window, operand 2']
    #allocation8 [shape = 'u8[65536]{0}', space=vmem, size = 0x10000, scoped, tag = 'output window, operand 0']
    %9 = vsyncpa [#allocation3], 0
    %s10 = scalar_lea.sflag [#allocation3], 1
    %11 = vsyncpa %s10, 0
    %12 = vsyncpa [#allocation6], 0
    %13 = vsyncpa [#allocation4], 0
    %s14 = scalar_lea.sflag [#allocation4], 1
    %15 = vsyncpa %s14, 0
    loop: start=0, step=1, limit=4
    $region2: #{tpu_custom_call.1} parent=1 // loop_pre_header
      _
    $region3: #{tpu_custom_call.1} parent=1 // loop_header
      %s17 = sphi 0, %s21
      %p18 = scmp.ge.s32.totalorder %s17, 4
      %s27 = sphi 0, %s29
      %s30 = sphi 0, %s27
      %s31 = sphi 0, %s30
      %s47 = sphi 0, %s31
      %s51 = sphi 0, %s51
      %s53 = sphi 0, %s51
      %s54 = sphi 0, %s53
      %s68 = sphi 0, %s54
      %s74 = sphi 0, %s76
      %s77 = sphi 0, %s74
      %s78 = sphi 0, %s77
      %s94 = sphi 0, %s78
      %s98 = sphi 0, %s98
      %s100 = sphi 0, %s98
      %s101 = sphi 0, %s100
      %s115 = sphi 0, %s101
      %s121 = sphi 0, %s123
      %s124 = sphi 0, %s121
      %s125 = sphi 0, %s124
      %s141 = sphi 0, %s125
    $region4: #{tpu_custom_call.1} parent=1 // loop_header_branch
      %20 = sbr.rel (%p18) target = $region8
    $region5: #{tpu_custom_call.1} parent=1 // loop_body
      %s22 = ssub.s32 %s17, 1
      %s23 = ssub.s32 %s17, 2
      %s24 = sadd.s32 %s17, 1
      %s25 = ssub.s32 %s17, %s24
      %p26 = scmp.eq.s32.totalorder %s25, 0
      %s28 = sadd.s32 %s27, 1
      %s29 = scalar_select %p26, %s27, %s28
      %p32 = pneg %p26
      %p33 = scmp.eq.s32.totalorder %s17, 1
      %p34 = por %p32, %p33
      %p35 = scmp.ne.s32.totalorder %s27, %s30
      %p36 = scmp.eq.s32.totalorder %s17, 0
      %p37 = por %p35, %p36
      %p38 = scmp.ne.s32.totalorder %s27, %s30
      %p39 = scmp.eq.s32.totalorder %s22, 1
      %p40 = por %p38, %p39
      %p41 = scmp.ne.s32.totalorder %s30, %s31
      %p42 = scmp.eq.s32.totalorder %s22, 0
      %p43 = por %p41, %p42
      %p44 = scmp.ne.s32.totalorder %s30, %s31
      %p45 = scmp.eq.s32.totalorder %s23, 1
      %p46 = por %p44, %p45
      %p48 = scmp.ne.s32.totalorder %s31, %s47
      %p49 = scmp.eq.s32.totalorder %s23, 0
      %p50 = por %p48, %p49
      %s52 = sadd.s32 %s51, 1
      %p55 = scmp.eq.s32.totalorder %s17, 1
      %p56 = scmp.ne.s32.totalorder %s51, %s53
      %p57 = scmp.eq.s32.totalorder %s17, 0
      %p58 = por %p56, %p57
      %p59 = scmp.ne.s32.totalorder %s51, %s53
      %p60 = scmp.eq.s32.totalorder %s22, 1
      %p61 = por %p59, %p60
      %p62 = scmp.ne.s32.totalorder %s53, %s54
      %p63 = scmp.eq.s32.totalorder %s22, 0
      %p64 = por %p62, %p63
      %p65 = scmp.ne.s32.totalorder %s53, %s54
      %p66 = scmp.eq.s32.totalorder %s23, 1
      %p67 = por %p65, %p66
      %p69 = scmp.ne.s32.totalorder %s54, %s68
      %p70 = scmp.eq.s32.totalorder %s23, 0
      %p71 = por %p69, %p70
      %s72 = ssub.s32 %s17, %s24
      %p73 = scmp.eq.s32.totalorder %s72, 0
      %s75 = sadd.s32 %s74, 1
      %s76 = scalar_select %p73, %s74, %s75
      %p79 = pneg %p73
      %p80 = scmp.eq.s32.totalorder %s17, 1
      %p81 = por %p79, %p80
      %p82 = scmp.ne.s32.totalorder %s74, %s77
      %p83 = scmp.eq.s32.totalorder %s17, 0
      %p84 = por %p82, %p83
      %p85 = scmp.ne.s32.totalorder %s74, %s77
      %p86 = scmp.eq.s32.totalorder %s22, 1
      %p87 = por %p85, %p86
      %p88 = scmp.ne.s32.totalorder %s77, %s78
      %p89 = scmp.eq.s32.totalorder %s22, 0
      %p90 = por %p88, %p89
      %p91 = scmp.ne.s32.totalorder %s77, %s78
      %p92 = scmp.eq.s32.totalorder %s23, 1
      %p93 = por %p91, %p92
      %p95 = scmp.ne.s32.totalorder %s78, %s94
      %p96 = scmp.eq.s32.totalorder %s23, 0
      %p97 = por %p95, %p96
      %s99 = sadd.s32 %s98, 1
      %p102 = scmp.eq.s32.totalorder %s17, 1
      %p103 = scmp.ne.s32.totalorder %s98, %s100
      %p104 = scmp.eq.s32.totalorder %s17, 0
      %p105 = por %p103, %p104
      %p106 = scmp.ne.s32.totalorder %s98, %s100
      %p107 = scmp.eq.s32.totalorder %s22, 1
      %p108 = por %p106, %p107
      %p109 = scmp.ne.s32.totalorder %s100, %s101
      %p110 = scmp.eq.s32.totalorder %s22, 0
      %p111 = por %p109, %p110
      %p112 = scmp.ne.s32.totalorder %s100, %s101
      %p113 = scmp.eq.s32.totalorder %s23, 1
      %p114 = por %p112, %p113
      %p116 = scmp.ne.s32.totalorder %s101, %s115
      %p117 = scmp.eq.s32.totalorder %s23, 0
      %p118 = por %p116, %p117
      %s119 = ssub.s32 %s17, %s24
      %p120 = scmp.eq.s32.totalorder %s119, 0
      %s122 = sadd.s32 %s121, 1
      %s123 = scalar_select %p120, %s121, %s122
      %p126 = pneg %p120
      %p127 = scmp.eq.s32.totalorder %s17, 1
      %p128 = por %p126, %p127
      %p129 = scmp.ne.s32.totalorder %s121, %s124
      %p130 = scmp.eq.s32.totalorder %s17, 0
      %p131 = por %p129, %p130
      %p132 = scmp.ne.s32.totalorder %s121, %s124
      %p133 = scmp.eq.s32.totalorder %s22, 1
      %p134 = por %p132, %p133
      %p135 = scmp.ne.s32.totalorder %s124, %s125
      %p136 = scmp.eq.s32.totalorder %s22, 0
      %p137 = por %p135, %p136
      %p138 = scmp.ne.s32.totalorder %s124, %s125
      %p139 = scmp.eq.s32.totalorder %s23, 1
      %p140 = por %p138, %p139
      %p142 = scmp.ne.s32.totalorder %s125, %s141
      %p143 = scmp.eq.s32.totalorder %s23, 0
      %p144 = por %p142, %p143
      %p145 = scmp.le.s32.totalorder 1, %s17
      %p146 = scmp.lt.s32.totalorder %s17, 3
      %p147 = pnand %p145, %p146
      %p148 = pneg %p147
      // Predicated region
      $region9: #{tpu_custom_call.1} parent=5 // pred_check
        _
      $region10: #{tpu_custom_call.1} parent=5 // pred_check_branch
        %150 = sbr.rel (%p147) target = $region12
      $region11: #{tpu_custom_call.1} parent=5 // pred_region
        %s151 = ssub.s32 %s17, 1
        // Predicated region
        $region13: #{tpu_custom_call.1} parent=11 // pred_check
          %p152 = pneg %p64
        $region14: #{tpu_custom_call.1} parent=11 // pred_check_branch
          %154 = sbr.rel (%p152) target = $region16
        $region15: #{tpu_custom_call.1} parent=11 // pred_region
          %s156 = ssub.s32 1024, 1024
          %157 = vsyncadd [#allocation6], %s156
          %s158 = sshll.u32 [#allocation5], 4
          %s159 = int_to_ptr.vmem [resolvable:$true] %s158
          %164 = dma.hbm_to_vmem [thread:$0]  %s1, 1024, %s159, [#allocation6], 64, 64, 4
        $region16: #{tpu_custom_call.1} parent=11 // pred_fallthru
          _
        // Predicated region
        $region17: #{tpu_custom_call.1} parent=11 // pred_check
          %p165 = pneg %p111
        $region18: #{tpu_custom_call.1} parent=11 // pred_check_branch
          %167 = sbr.rel (%p165) target = $region20
        $region19: #{tpu_custom_call.1} parent=11 // pred_region
          _
        $region20: #{tpu_custom_call.1} parent=11 // pred_fallthru
          _
      $region12: #{tpu_custom_call.1} parent=5 // pred_fallthru
        _
      %p168 = scmp.lt.s32.totalorder %s17, 2
      // Predicated region
      $region21: #{tpu_custom_call.1} parent=5 // pred_check
        %p169 = pneg %p168
      $region22: #{tpu_custom_call.1} parent=5 // pred_check_branch
        %171 = sbr.rel (%p169) target = $region24
      $region23: #{tpu_custom_call.1} parent=5 // pred_region
        // Predicated region
        $region25: #{tpu_custom_call.1} parent=23 // pred_check
          %p172 = pneg %p37
        $region26: #{tpu_custom_call.1} parent=23 // pred_check_branch
          %174 = sbr.rel (%p172) target = $region28
        $region27: #{tpu_custom_call.1} parent=23 // pred_region
          %s175 = sand.u32 %s27, 1
          %s176 = scalar_lea.sflag [#allocation3], %s175
          %s177 = sand.u32 %s27, 1
          %s178 = smul.addr %s177, 16
          %s179 = scalar_lea.vmem [#allocation2], %s178
          %s180 = smul.u32 2, %s17
          %s182 = ssub.s32 256, 256
          %183 = vsyncadd %s176, %s182
          %s184 = smul.addr %s180, 128
          %s185 = scalar_lea.hbm %s0, %s184
          %s186 = sshll.u32 %s179, 4
          %s187 = int_to_ptr.vmem [resolvable:$true] %s186
          %192 = dma.hbm_to_vmem [thread:$0]  %s185, 256, %s187, %s176, 128, 128, 8
        $region28: #{tpu_custom_call.1} parent=23 // pred_fallthru
          _
        // Predicated region
        $region29: #{tpu_custom_call.1} parent=23 // pred_check
          %p193 = pneg %p84
        $region30: #{tpu_custom_call.1} parent=23 // pred_check_branch
          %195 = sbr.rel (%p193) target = $region32
        $region31: #{tpu_custom_call.1} parent=23 // pred_region
          %s196 = sand.u32 %s74, 1
          %s197 = sand.u32 %s74, 1
          %s198 = smul.addr %s197, 96
          %s199 = scalar_lea.vmem [#allocation7], %s198
          %s200 = smul.u32 8, %s17
          %s201 = smul.addr %s200, 4
          %s202 = scalar_lea.vmem %s2, %s201
          // Predicated region
          $region33: #{tpu_custom_call.1} parent=31 // pred_check
            _
          $region34: #{tpu_custom_call.1} parent=31 // pred_check_branch
            %204 = sbr.rel (0) target = $region36
          $region35: #{tpu_custom_call.1} parent=31 // pred_region
            // Predicated region
            $region37: #{tpu_custom_call.1} parent=35 // pred_check
              _
            $region38: #{tpu_custom_call.1} parent=35 // pred_check_branch
              %206 = sbr.rel target = $region40
            $region39: #{tpu_custom_call.1} parent=35 // pred_region
              // Predicated region
              $region52: #{tpu_custom_call.1} parent=39 // pred_check
                _
              $region53: #{tpu_custom_call.1} parent=39 // pred_check_branch
                %267 = sbr.rel (0) target = $region55
              $region54: #{tpu_custom_call.1} parent=39 // pred_region
                loop: start=0, step=1, limit=1
                $region56: #{tpu_custom_call.1} parent=54 // loop_pre_header
                  _
                $region57: #{tpu_custom_call.1} parent=54 // loop_header
                  %s269 = sphi 0, %s273
                  %p270 = scmp.ge.s32.totalorder %s269, 1
                  %s274 = sphi %s202, %s202
                  %s275 = sphi %s199, %s199
                $region58: #{tpu_custom_call.1} parent=54 // loop_header_branch
                  %272 = sbr.rel (%p270) target = $region62
                $region59: #{tpu_custom_call.1} parent=54 // loop_body
                  _
                $region60: #{tpu_custom_call.1} parent=54 // loop_footer
                  %s273 = sadd.s32 1, %s269
                $region61: #{tpu_custom_call.1} parent=54 // loop_footer_branch
                  %268 = sbr.rel target = $region57
                $region62: #{tpu_custom_call.1} parent=54 // loop_exit
                  _
                loop: start=0, step=1, limit=1
                $region63: #{tpu_custom_call.1} parent=54 // loop_pre_header
                  _
                $region64: #{tpu_custom_call.1} parent=54 // loop_header
                  %s278 = sphi 0, %s282
                  %p279 = scmp.ge.s32.totalorder %s278, 1
                  %s283 = sphi %s202, %s202
                  %s284 = sphi %s199, %s199
                $region65: #{tpu_custom_call.1} parent=54 // loop_header_branch
                  %281 = sbr.rel (%p279) target = $region69
                $region66: #{tpu_custom_call.1} parent=54 // loop_body
                  %v285 = vld [vmem:[%s283] sm:$0xf]
                  %286 = vst [vmem:[%s284] sm:$0xf] %v285
                  %v287 = vld [vmem:[%s283 + $0x4] sm:$0xf]
                  %288 = vst [vmem:[%s284 + $0x4] sm:$0xf] %v287
                  %v289 = vld [vmem:[%s283 + $0x8] sm:$0xf]
                  %290 = vst [vmem:[%s284 + $0x8] sm:$0xf] %v289
                  %v291 = vld [vmem:[%s283 + $0xc] sm:$0xf]
                  %292 = vst [vmem:[%s284 + $0xc] sm:$0xf] %v291
                  %v293 = vld [vmem:[%s283 + $0x10] sm:$0xf]
                  %294 = vst [vmem:[%s284 + $0x10] sm:$0xf] %v293
                  %v295 = vld [vmem:[%s283 + $0x14] sm:$0xf]
                  %296 = vst [vmem:[%s284 + $0x14] sm:$0xf] %v295
                  %v297 = vld [vmem:[%s283 + $0x18] sm:$0xf]
                  %298 = vst [vmem:[%s284 + $0x18] sm:$0xf] %v297
                  %v299 = vld [vmem:[%s283 + $0x1c] sm:$0xf]
                  %300 = vst [vmem:[%s284 + $0x1c] sm:$0xf] %v299
                  %v301 = vld [vmem:[%s283 + $0x40] sm:$0xf]
                  %302 = vst [vmem:[%s284 + $0x20] sm:$0xf] %v301
                  %v303 = vld [vmem:[%s283 + $0x44] sm:$0xf]
                  %304 = vst [vmem:[%s284 + $0x24] sm:$0xf] %v303
                  %v305 = vld [vmem:[%s283 + $0x48] sm:$0xf]
                  %306 = vst [vmem:[%s284 + $0x28] sm:$0xf] %v305
                  %v307 = vld [vmem:[%s283 + $0x4c] sm:$0xf]
                  %308 = vst [vmem:[%s284 + $0x2c] sm:$0xf] %v307
                  %v309 = vld [vmem:[%s283 + $0x50] sm:$0xf]
                  %310 = vst [vmem:[%s284 + $0x30] sm:$0xf] %v309
                  %v311 = vld [vmem:[%s283 + $0x54] sm:$0xf]
                  %312 = vst [vmem:[%s284 + $0x34] sm:$0xf] %v311
                  %v313 = vld [vmem:[%s283 + $0x58] sm:$0xf]
                  %314 = vst [vmem:[%s284 + $0x38] sm:$0xf] %v313
                  %v315 = vld [vmem:[%s283 + $0x5c] sm:$0xf]
                  %316 = vst [vmem:[%s284 + $0x3c] sm:$0xf] %v315
                  %v317 = vld [vmem:[%s283 + $0x80] sm:$0xf]
                  %318 = vst [vmem:[%s284 + $0x40] sm:$0xf] %v317
                  %v319 = vld [vmem:[%s283 + $0x84] sm:$0xf]
                  %320 = vst [vmem:[%s284 + $0x44] sm:$0xf] %v319
                  %v321 = vld [vmem:[%s283 + $0x88] sm:$0xf]
                  %322 = vst [vmem:[%s284 + $0x48] sm:$0xf] %v321
                  %v323 = vld [vmem:[%s283 + $0x8c] sm:$0xf]
                  %324 = vst [vmem:[%s284 + $0x4c] sm:$0xf] %v323
                  %v325 = vld [vmem:[%s283 + $0x90] sm:$0xf]
                  %326 = vst [vmem:[%s284 + $0x50] sm:$0xf] %v325
                  %v327 = vld [vmem:[%s283 + $0x94] sm:$0xf]
                  %328 = vst [vmem:[%s284 + $0x54] sm:$0xf] %v327
                  %v329 = vld [vmem:[%s283 + $0x98] sm:$0xf]
                  %330 = vst [vmem:[%s284 + $0x58] sm:$0xf] %v329
                  %v331 = vld [vmem:[%s283 + $0x9c] sm:$0xf]
                  %332 = vst [vmem:[%s284 + $0x5c] sm:$0xf] %v331
                $region67: #{tpu_custom_call.1} parent=54 // loop_footer
                  %s282 = sadd.s32 1, %s278
                $region68: #{tpu_custom_call.1} parent=54 // loop_footer_branch
                  %277 = sbr.rel target = $region64
                $region69: #{tpu_custom_call.1} parent=54 // loop_exit
                  _
              $region55: #{tpu_custom_call.1} parent=39 // pred_fallthru
                _
            $region40: #{tpu_custom_call.1} parent=35 // pred_fallthru
              _
            // Predicated region
            $region41: #{tpu_custom_call.1} parent=35 // pred_check
              _
            $region42: #{tpu_custom_call.1} parent=35 // pred_check_branch
              %208 = sbr.rel (0) target = $region44
            $region43: #{tpu_custom_call.1} parent=35 // pred_region
              loop: start=0, step=1, limit=1
              $region45: #{tpu_custom_call.1} parent=43 // loop_pre_header
                _
              $region46: #{tpu_custom_call.1} parent=43 // loop_header
                %s211 = sphi 0, %s215
                %p212 = scmp.ge.s32.totalorder %s211, 1
                %s216 = sphi %s202, %s202
                %s217 = sphi %s199, %s199
              $region47: #{tpu_custom_call.1} parent=43 // loop_header_branch
                %214 = sbr.rel (%p212) target = $region51
              $region48: #{tpu_custom_call.1} parent=43 // loop_body
                %v218 = vld [vmem:[%s216] sm:$0xf]
                %219 = vst [vmem:[%s217] sm:$0xf] %v218
                %v220 = vld [vmem:[%s216 + $0x4] sm:$0xf]
                %221 = vst [vmem:[%s217 + $0x4] sm:$0xf] %v220
                %v222 = vld [vmem:[%s216 + $0x8] sm:$0xf]
                %223 = vst [vmem:[%s217 + $0x8] sm:$0xf] %v222
                %v224 = vld [vmem:[%s216 + $0xc] sm:$0xf]
                %225 = vst [vmem:[%s217 + $0xc] sm:$0xf] %v224
                %v226 = vld [vmem:[%s216 + $0x10] sm:$0xf]
                %227 = vst [vmem:[%s217 + $0x10] sm:$0xf] %v226
                %v228 = vld [vmem:[%s216 + $0x14] sm:$0xf]
                %229 = vst [vmem:[%s217 + $0x14] sm:$0xf] %v228
                %v230 = vld [vmem:[%s216 + $0x18] sm:$0xf]
                %231 = vst [vmem:[%s217 + $0x18] sm:$0xf] %v230
                %v232 = vld [vmem:[%s216 + $0x1c] sm:$0xf]
                %233 = vst [vmem:[%s217 + $0x1c] sm:$0xf] %v232
                %v234 = vld [vmem:[%s216 + $0x40] sm:$0xf]
                %235 = vst [vmem:[%s217 + $0x20] sm:$0xf] %v234
                %v236 = vld [vmem:[%s216 + $0x44] sm:$0xf]
                %237 = vst [vmem:[%s217 + $0x24] sm:$0xf] %v236
                %v238 = vld [vmem:[%s216 + $0x48] sm:$0xf]
                %239 = vst [vmem:[%s217 + $0x28] sm:$0xf] %v238
                %v240 = vld [vmem:[%s216 + $0x4c] sm:$0xf]
                %241 = vst [vmem:[%s217 + $0x2c] sm:$0xf] %v240
                %v242 = vld [vmem:[%s216 + $0x50] sm:$0xf]
                %243 = vst [vmem:[%s217 + $0x30] sm:$0xf] %v242
                %v244 = vld [vmem:[%s216 + $0x54] sm:$0xf]
                %245 = vst [vmem:[%s217 + $0x34] sm:$0xf] %v244
                %v246 = vld [vmem:[%s216 + $0x58] sm:$0xf]
                %247 = vst [vmem:[%s217 + $0x38] sm:$0xf] %v246
                %v248 = vld [vmem:[%s216 + $0x5c] sm:$0xf]
                %249 = vst [vmem:[%s217 + $0x3c] sm:$0xf] %v248
                %v250 = vld [vmem:[%s216 + $0x80] sm:$0xf]
                %251 = vst [vmem:[%s217 + $0x40] sm:$0xf] %v250
                %v252 = vld [vmem:[%s216 + $0x84] sm:$0xf]
                %253 = vst [vmem:[%s217 + $0x44] sm:$0xf] %v252
                %v254 = vld [vmem:[%s216 + $0x88] sm:$0xf]
                %255 = vst [vmem:[%s217 + $0x48] sm:$0xf] %v254
                %v256 = vld [vmem:[%s216 + $0x8c] sm:$0xf]
                %257 = vst [vmem:[%s217 + $0x4c] sm:$0xf] %v256
                %v258 = vld [vmem:[%s216 + $0x90] sm:$0xf]
                %259 = vst [vmem:[%s217 + $0x50] sm:$0xf] %v258
                %v260 = vld [vmem:[%s216 + $0x94] sm:$0xf]
                %261 = vst [vmem:[%s217 + $0x54] sm:$0xf] %v260
                %v262 = vld [vmem:[%s216 + $0x98] sm:$0xf]
                %263 = vst [vmem:[%s217 + $0x58] sm:$0xf] %v262
                %v264 = vld [vmem:[%s216 + $0x9c] sm:$0xf]
                %265 = vst [vmem:[%s217 + $0x5c] sm:$0xf] %v264
              $region49: #{tpu_custom_call.1} parent=43 // loop_footer
                %s215 = sadd.s32 1, %s211
              $region50: #{tpu_custom_call.1} parent=43 // loop_footer_branch
                %210 = sbr.rel target = $region46
              $region51: #{tpu_custom_call.1} parent=43 // loop_exit
                _
            $region44: #{tpu_custom_call.1} parent=35 // pred_fallthru
              _
          $region36: #{tpu_custom_call.1} parent=31 // pred_fallthru
            _
          %333 = vnop
        $region32: #{tpu_custom_call.1} parent=23 // pred_fallthru
          _
      $region24: #{tpu_custom_call.1} parent=5 // pred_fallthru
        _
      %p334 = scmp.le.s32.totalorder 1, %s17
      %p335 = scmp.lt.s32.totalorder %s17, 3
      %p336 = pnand %p334, %p335
      %p337 = pneg %p336
      // Predicated region
      $region70: #{tpu_custom_call.1} parent=5 // pred_check
        _
      $region71: #{tpu_custom_call.1} parent=5 // pred_check_branch
        %339 = sbr.rel (%p336) target = $region73
      $region72: #{tpu_custom_call.1} parent=5 // pred_region
        %s340 = ssub.s32 %s17, 1
        %s341 = sand.u32 %s30, 1
        %s342 = scalar_lea.sflag [#allocation3], %s341
        %s343 = sand.u32 %s30, 1
        %s344 = smul.addr %s343, 16
        %s345 = scalar_lea.vmem [#allocation2], %s344
        // Predicated region
        $region74: #{tpu_custom_call.1} parent=72 // pred_check
          %p346 = pneg %p43
        $region75: #{tpu_custom_call.1} parent=72 // pred_check_branch
          %348 = sbr.rel (%p346) target = $region77
        $region76: #{tpu_custom_call.1} parent=72 // pred_region
          %349 = dma.done %s342, 256
        $region77: #{tpu_custom_call.1} parent=72 // pred_fallthru
          _
        // Predicated region
        $region78: #{tpu_custom_call.1} parent=72 // pred_check
          %p350 = pneg %p64
        $region79: #{tpu_custom_call.1} parent=72 // pred_check_branch
          %352 = sbr.rel (%p350) target = $region81
        $region80: #{tpu_custom_call.1} parent=72 // pred_region
          %353 = dma.done [#allocation6], 1024
        $region81: #{tpu_custom_call.1} parent=72 // pred_fallthru
          _
        %s354 = sand.u32 %s77, 1
        %s355 = sand.u32 %s77, 1
        %s356 = smul.addr %s355, 96
        %s357 = scalar_lea.vmem [#allocation7], %s356
        // Predicated region
        $region82: #{tpu_custom_call.1} parent=72 // pred_check
          %p358 = pneg %p90
        $region83: #{tpu_custom_call.1} parent=72 // pred_check_branch
          %360 = sbr.rel (%p358) target = $region85
        $region84: #{tpu_custom_call.1} parent=72 // pred_region
          _
        $region85: #{tpu_custom_call.1} parent=72 // pred_fallthru
          _
        %s361 = sand.u32 %s30, 1
        %s362 = scalar_lea.sflag [#allocation3], %s361
        %s363 = sand.u32 %s30, 1
        %s364 = smul.addr %s363, 16
        %s365 = scalar_lea.vmem [#allocation2], %s364
        %p366 = pneg %p43
        %p367 = pneg %p40
        %p368 = pneg %p64
        %p369 = pneg %p61
        %s370 = sand.u32 %s77, 1
        %s371 = sand.u32 %s77, 1
        %s372 = smul.addr %s371, 96
        %s373 = scalar_lea.vmem [#allocation7], %s372
        %p374 = pneg %p90
        %p375 = pneg %p87
        %p376 = pneg %p111
        %p377 = pneg %p108
        %p378 = pneg %p137
        %p379 = pneg %p134
        %s380 = sand.u32 %s124, 1
        %s381 = scalar_lea.sflag [#allocation4], %s380
        %s382 = sand.u32 %s124, 1
        %s383 = smul.addr %s382, 64
        %s384 = scalar_lea.vmem [#allocation8], %s383
        %s385 = smul.u32 2, %s22
        %s386 = smul.u32 8, %s22
        %s387 = smul.u32 8, %s22
        %v389 = vld [vmem:[%s345] sm:$0xff]
        %v390 = vld [vmem:[%s345 + $0x8] sm:$0xff]
        %v391 = vunpack.c.l.s8.bf16 %v389
        %v392 = vunpack.c.h.s8.bf16 %v389
        %v393 = vunpack.c.l.s8.bf16 %v390
        %v394 = vunpack.c.h.s8.bf16 %v390
        %v395 = vld [vmem:[#allocation5] sm:$0xf]
        %v396 = vld [vmem:[#allocation5 + $0x4] sm:$0xf]
        %v397 = vld [vmem:[#allocation5 + $0x8] sm:$0xf]
        %v398 = vld [vmem:[#allocation5 + $0xc] sm:$0xf]
        %v399 = vld [vmem:[#allocation5 + $0x10] sm:$0xf]
        %v400 = vld [vmem:[#allocation5 + $0x14] sm:$0xf]
        %v401 = vld [vmem:[#allocation5 + $0x18] sm:$0xf]
        %v402 = vld [vmem:[#allocation5 + $0x1c] sm:$0xf]
        %v403 = vld [vmem:[#allocation5 + $0x20] sm:$0xf]
        %v404 = vld [vmem:[#allocation5 + $0x24] sm:$0xf]
        %v405 = vld [vmem:[#allocation5 + $0x28] sm:$0xf]
        %v406 = vld [vmem:[#allocation5 + $0x2c] sm:$0xf]
        %v407 = vld [vmem:[#allocation5 + $0x30] sm:$0xf]
        %v408 = vld [vmem:[#allocation5 + $0x34] sm:$0xf]
        %v409 = vld [vmem:[#allocation5 + $0x38] sm:$0xf]
        %v410 = vld [vmem:[#allocation5 + $0x3c] sm:$0xf]
        %v427 = vunpack.c.l.b16 %v395
        %v428 = vunpack.c.l.b16 %v396
        %v429 = vunpack.c.l.b16 %v397
        %v430 = vunpack.c.l.b16 %v398
        %v431 = vunpack.c.l.b16 %v399
        %v432 = vunpack.c.l.b16 %v400
        %v433 = vunpack.c.l.b16 %v401
        %v434 = vunpack.c.l.b16 %v402
        %v435 = vunpack.c.l.b16 %v403
        %v436 = vunpack.c.l.b16 %v404
        %v437 = vunpack.c.l.b16 %v405
        %v438 = vunpack.c.l.b16 %v406
        %v439 = vunpack.c.l.b16 %v407
        %v440 = vunpack.c.l.b16 %v408
        %v441 = vunpack.c.l.b16 %v409
        %v442 = vunpack.c.l.b16 %v410
        %v443 = vpack.c.b16 %v428, %v427
        %v444 = vpack.c.b16 %v430, %v429
        %v445 = vpack.c.b16 %v432, %v431
        %v446 = vpack.c.b16 %v434, %v433
        %v447 = vpack.c.b16 %v436, %v435
        %v448 = vpack.c.b16 %v438, %v437
        %v449 = vpack.c.b16 %v440, %v439
        %v450 = vpack.c.b16 %v442, %v441
        %459 = vmatprep.subr.bf16.mxu0 0
        %460 = vmatpush1.bf16.msra.mxu0 %v443
        %461 = vmatprep.subr.bf16.mxu0 0
        %462 = vmatpush1.bf16.msra.mxu0 %v444
        %463 = vmatprep.subr.bf16.mxu0 0
        %464 = vmatpush1.bf16.msra.mxu0 %v445
        %465 = vmatprep.subr.bf16.mxu0 0
        %466 = vmatpush1.bf16.msra.mxu0 %v446
        %467 = vmatprep.subr.bf16.mxu0 0
        %468 = vmatpush1.bf16.msra.mxu0 %v447
        %469 = vmatprep.subr.bf16.mxu0 0
        %470 = vmatpush1.bf16.msra.mxu0 %v448
        %471 = vmatprep.subr.bf16.mxu0 0
        %472 = vmatpush1.bf16.msra.mxu0 %v449
        %473 = vmatprep.subr.bf16.mxu0 0
        %474 = vmatpush1.bf16.msra.mxu0 %v450
        %475 = vmatprep.subr.bf16.mxu0 0
        %476 = vmatpush1.bf16.msra.mxu0 0
        %477 = vmatprep.subr.bf16.mxu0 0
        %478 = vmatpush1.bf16.msra.mxu0 0
        %479 = vmatprep.subr.bf16.mxu0 0
        %480 = vmatpush1.bf16.msra.mxu0 0
        %481 = vmatprep.subr.bf16.mxu0 0
        %482 = vmatpush1.bf16.msra.mxu0 0
        %483 = vmatprep.subr.bf16.mxu0 0
        %484 = vmatpush1.bf16.msra.mxu0 0
        %485 = vmatprep.subr.bf16.mxu0 0
        %486 = vmatpush1.bf16.msra.mxu0 0
        %487 = vmatprep.subr.bf16.mxu0 0
        %488 = vmatpush1.bf16.msra.mxu0 0
        %489 = vmatprep.subr.bf16.mxu0 0
        %490 = vmatpush1.bf16.msra.mxu0 0
        %491 = vmatprep.mubr.bf16.mxu0 0
        %492 = vmatmul.mubr.bf16.gmra.mrb[0].mxu0 %v391
        %v493 = vpop.f32.mrb[0].mxu0
        %v494 = vadd.f32 0.0, %v493
        %v495 = vpop.f32.mrb[0].mxu0
        %v496 = vpop.f32.mrb[0].mxu0
        %v497 = vadd.f32 0.0, %v496
        %v498 = vpop.f32.mrb[0].mxu0
        %499 = vmatprep.mubr.bf16.mxu0 0
        %500 = vmatmul.mubr.bf16.gmra.mrb[0].mxu0 %v392
        %v501 = vpop.f32.mrb[0].mxu0
        %v502 = vadd.f32 0.0, %v501
        %v503 = vpop.f32.mrb[0].mxu0
        %v504 = vpop.f32.mrb[0].mxu0
        %v505 = vadd.f32 0.0, %v504
        %v506 = vpop.f32.mrb[0].mxu0
        %507 = vmatprep.mubr.bf16.mxu0 0
        %508 = vmatmul.mubr.bf16.gmra.mrb[0].mxu0 %v393
        %v509 = vpop.f32.mrb[0].mxu0
        %v510 = vadd.f32 0.0, %v509
        %v511 = vpop.f32.mrb[0].mxu0
        %v512 = vpop.f32.mrb[0].mxu0
        %v513 = vadd.f32 0.0, %v512
        %v514 = vpop.f32.mrb[0].mxu0
        %515 = vmatprep.mubr.bf16.mxu0 0
        %516 = vmatmul.mubr.bf16.gmra.mrb[0].mxu0 %v394
        %v517 = vpop.f32.mrb[0].mxu0
        %v518 = vadd.f32 0.0, %v517
        %v519 = vpop.f32.mrb[0].mxu0
        %v520 = vpop.f32.mrb[0].mxu0
        %v521 = vadd.f32 0.0, %v520
        %v522 = vpop.f32.mrb[0].mxu0
        %523 = vdwg.mxu0
        %v524 = vpack.c.bf16 %v497, %v494
        %v525 = vpack.c.bf16 %v505, %v502
        %v526 = vpack.c.bf16 %v513, %v510
        %v527 = vpack.c.bf16 %v521, %v518
        %v528 = vld [vmem:[%s357] sm:$0xf]
        %v529 = vld [vmem:[%s357 + $0x4] sm:$0xf]
        %v530 = vld [vmem:[%s357 + $0x8] sm:$0xf]
        %v531 = vld [vmem:[%s357 + $0xc] sm:$0xf]
        %v532 = vld [vmem:[%s357 + $0x10] sm:$0xf]
        %v533 = vld [vmem:[%s357 + $0x14] sm:$0xf]
        %v534 = vld [vmem:[%s357 + $0x18] sm:$0xf]
        %v535 = vld [vmem:[%s357 + $0x1c] sm:$0xf]
        %537 = vset.pattern.permute.xlu0 0
        %538 = vperm.xlu0 %537, %v528
        %v539 = vpop.permute.xlu0 %538
        %v542 = vunpack.c.l.s4 839922192
        %v543 = vunpack.c.0.s8 %v542
        %v544 = vlaneseq
        %v545 = vshrl.u32 %v544, 7
        %v546 = vsub.s32 %v543, %v545
        %v547 = vrot.slane %v539, %v546
        %549 = vset.pattern.permute.xlu0 0
        %550 = vperm.xlu0 %549, %v529
        %v551 = vpop.permute.xlu0 %550
        %v554 = vunpack.c.l.s4 839922192
        %v555 = vunpack.c.0.s8 %v554
        %v556 = vlaneseq
        %v557 = vshrl.u32 %v556, 7
        %v558 = vsub.s32 %v555, %v557
        %v559 = vrot.slane %v551, %v558
        %561 = vset.pattern.permute.xlu0 0
        %562 = vperm.xlu0 %561, %v530
        %v563 = vpop.permute.xlu0 %562
        %v566 = vunpack.c.l.s4 839922192
        %v567 = vunpack.c.0.s8 %v566
        %v568 = vlaneseq
        %v569 = vshrl.u32 %v568, 7
        %v570 = vsub.s32 %v567, %v569
        %v571 = vrot.slane %v563, %v570
        %573 = vset.pattern.permute.xlu0 0
        %574 = vperm.xlu0 %573, %v531
        %v575 = vpop.permute.xlu0 %574
        %v578 = vunpack.c.l.s4 839922192
        %v579 = vunpack.c.0.s8 %v578
        %v580 = vlaneseq
        %v581 = vshrl.u32 %v580, 7
        %v582 = vsub.s32 %v579, %v581
        %v583 = vrot.slane %v575, %v582
        %585 = vset.pattern.permute.xlu0 0
        %586 = vperm.xlu0 %585, %v532
        %v587 = vpop.permute.xlu0 %586
        %v590 = vunpack.c.l.s4 839922192
        %v591 = vunpack.c.0.s8 %v590
        %v592 = vlaneseq
        %v593 = vshrl.u32 %v592, 7
        %v594 = vsub.s32 %v591, %v593
        %v595 = vrot.slane %v587, %v594
        %597 = vset.pattern.permute.xlu0 0
        %598 = vperm.xlu0 %597, %v533
        %v599 = vpop.permute.xlu0 %598
        %v602 = vunpack.c.l.s4 839922192
        %v603 = vunpack.c.0.s8 %v602
        %v604 = vlaneseq
        %v605 = vshrl.u32 %v604, 7
        %v606 = vsub.s32 %v603, %v605
        %v607 = vrot.slane %v599, %v606
        %609 = vset.pattern.permute.xlu0 0
        %610 = vperm.xlu0 %609, %v534
        %v611 = vpop.permute.xlu0 %610
        %v614 = vunpack.c.l.s4 839922192
        %v615 = vunpack.c.0.s8 %v614
        %v616 = vlaneseq
        %v617 = vshrl.u32 %v616, 7
        %v618 = vsub.s32 %v615, %v617
        %v619 = vrot.slane %v611, %v618
        %621 = vset.pattern.permute.xlu0 0
        %622 = vperm.xlu0 %621, %v535
        %v623 = vpop.permute.xlu0 %622
        %v626 = vunpack.c.l.s4 839922192
        %v627 = vunpack.c.0.s8 %v626
        %v628 = vlaneseq
        %v629 = vshrl.u32 %v628, 7
        %v630 = vsub.s32 %v627, %v629
        %v631 = vrot.slane %v623, %v630
        %v640 = vunpack.c.l.b16 %v547
        %v641 = vunpack.c.l.b16 %v559
        %v642 = vunpack.c.l.b16 %v571
        %v643 = vunpack.c.l.b16 %v583
        %v644 = vunpack.c.l.b16 %v595
        %v645 = vunpack.c.l.b16 %v607
        %v646 = vunpack.c.l.b16 %v619
        %v647 = vunpack.c.l.b16 %v631
        %v648 = vpack.c.b16 %v641, %v640
        %v649 = vpack.c.b16 %v643, %v642
        %v650 = vpack.c.b16 %v645, %v644
        %v651 = vpack.c.b16 %v647, %v646
        %v656 = vmul.bf16 %v524, %v648
        %v657 = vmul.bf16 %v525, %v649
        %v658 = vmul.bf16 %v526, %v650
        %v659 = vmul.bf16 %v527, %v651
        %v660 = vld [vmem:[%s3] sm:$0xf]
        %v661 = vld [vmem:[%s3 + $0x4] sm:$0xf]
        %v662 = vld [vmem:[%s3 + $0x8] sm:$0xf]
        %v663 = vld [vmem:[%s3 + $0xc] sm:$0xf]
        %v664 = vld [vmem:[%s3 + $0x10] sm:$0xf]
        %v665 = vld [vmem:[%s3 + $0x14] sm:$0xf]
        %v666 = vld [vmem:[%s3 + $0x18] sm:$0xf]
        %v667 = vld [vmem:[%s3 + $0x1c] sm:$0xf]
        %v668 = vld [vmem:[%s3 + $0x20] sm:$0xf]
        %v669 = vld [vmem:[%s3 + $0x24] sm:$0xf]
        %v670 = vld [vmem:[%s3 + $0x28] sm:$0xf]
        %v671 = vld [vmem:[%s3 + $0x2c] sm:$0xf]
        %v672 = vld [vmem:[%s3 + $0x30] sm:$0xf]
        %v673 = vld [vmem:[%s3 + $0x34] sm:$0xf]
        %v674 = vld [vmem:[%s3 + $0x38] sm:$0xf]
        %v675 = vld [vmem:[%s3 + $0x3c] sm:$0xf]
        %s676 = scalar_lea.vmem %s357, 32 [#allocation7]
        %v677 = vld [vmem:[%s676] sm:$0xf]
        %v678 = vld [vmem:[%s676 + $0x4] sm:$0xf]
        %v679 = vld [vmem:[%s676 + $0x8] sm:$0xf]
        %v680 = vld [vmem:[%s676 + $0xc] sm:$0xf]
        %v681 = vld [vmem:[%s676 + $0x10] sm:$0xf]
        %v682 = vld [vmem:[%s676 + $0x14] sm:$0xf]
        %v683 = vld [vmem:[%s676 + $0x18] sm:$0xf]
        %v684 = vld [vmem:[%s676 + $0x1c] sm:$0xf]
        %686 = vset.pattern.permute.xlu0 0
        %687 = vperm.xlu0 %686, %v677
        %v688 = vpop.permute.xlu0 %687
        %v691 = vunpack.c.l.s4 839922192
        %v692 = vunpack.c.0.s8 %v691
        %v693 = vlaneseq
        %v694 = vshrl.u32 %v693, 7
        %v695 = vsub.s32 %v692, %v694
        %v696 = vrot.slane %v688, %v695
        %698 = vset.pattern.permute.xlu0 0
        %699 = vperm.xlu0 %698, %v678
        %v700 = vpop.permute.xlu0 %699
        %v703 = vunpack.c.l.s4 839922192
        %v704 = vunpack.c.0.s8 %v703
        %v705 = vlaneseq
        %v706 = vshrl.u32 %v705, 7
        %v707 = vsub.s32 %v704, %v706
        %v708 = vrot.slane %v700, %v707
        %710 = vset.pattern.permute.xlu0 0
        %711 = vperm.xlu0 %710, %v679
        %v712 = vpop.permute.xlu0 %711
        %v715 = vunpack.c.l.s4 839922192
        %v716 = vunpack.c.0.s8 %v715
        %v717 = vlaneseq
        %v718 = vshrl.u32 %v717, 7
        %v719 = vsub.s32 %v716, %v718
        %v720 = vrot.slane %v712, %v719
        %722 = vset.pattern.permute.xlu0 0
        %723 = vperm.xlu0 %722, %v680
        %v724 = vpop.permute.xlu0 %723
        %v727 = vunpack.c.l.s4 839922192
        %v728 = vunpack.c.0.s8 %v727
        %v729 = vlaneseq
        %v730 = vshrl.u32 %v729, 7
        %v731 = vsub.s32 %v728, %v730
        %v732 = vrot.slane %v724, %v731
        %734 = vset.pattern.permute.xlu0 0
        %735 = vperm.xlu0 %734, %v681
        %v736 = vpop.permute.xlu0 %735
        %v739 = vunpack.c.l.s4 839922192
        %v740 = vunpack.c.0.s8 %v739
        %v741 = vlaneseq
        %v742 = vshrl.u32 %v741, 7
        %v743 = vsub.s32 %v740, %v742
        %v744 = vrot.slane %v736, %v743
        %746 = vset.pattern.permute.xlu0 0
        %747 = vperm.xlu0 %746, %v682
        %v748 = vpop.permute.xlu0 %747
        %v751 = vunpack.c.l.s4 839922192
        %v752 = vunpack.c.0.s8 %v751
        %v753 = vlaneseq
        %v754 = vshrl.u32 %v753, 7
        %v755 = vsub.s32 %v752, %v754
        %v756 = vrot.slane %v748, %v755
        %758 = vset.pattern.permute.xlu0 0
        %759 = vperm.xlu0 %758, %v683
        %v760 = vpop.permute.xlu0 %759
        %v763 = vunpack.c.l.s4 839922192
        %v764 = vunpack.c.0.s8 %v763
        %v765 = vlaneseq
        %v766 = vshrl.u32 %v765, 7
        %v767 = vsub.s32 %v764, %v766
        %v768 = vrot.slane %v760, %v767
        %770 = vset.pattern.permute.xlu0 0
        %771 = vperm.xlu0 %770, %v684
        %v772 = vpop.permute.xlu0 %771
        %v775 = vunpack.c.l.s4 839922192
        %v776 = vunpack.c.0.s8 %v775
        %v777 = vlaneseq
        %v778 = vshrl.u32 %v777, 7
        %v779 = vsub.s32 %v776, %v778
        %v780 = vrot.slane %v772, %v779
        %v789 = vunpack.c.l.b16 %v696
        %v790 = vunpack.c.l.b16 %v708
        %v791 = vunpack.c.l.b16 %v720
        %v792 = vunpack.c.l.b16 %v732
        %v793 = vunpack.c.l.b16 %v744
        %v794 = vunpack.c.l.b16 %v756
        %v795 = vunpack.c.l.b16 %v768
        %v796 = vunpack.c.l.b16 %v780
        %v797 = vpack.c.b16 %v790, %v789
        %v798 = vpack.c.b16 %v792, %v791
        %v799 = vpack.c.b16 %v794, %v793
        %v800 = vpack.c.b16 %v796, %v795
        %v805 = vmul.bf16 %v524, %v797
        %v806 = vmul.bf16 %v525, %v798
        %v807 = vmul.bf16 %v526, %v799
        %v808 = vmul.bf16 %v527, %v800
        %s809 = scalar_lea.vmem %s3, 64
        %v810 = vld [vmem:[%s809] sm:$0xf]
        %v811 = vld [vmem:[%s809 + $0x4] sm:$0xf]
        %v812 = vld [vmem:[%s809 + $0x8] sm:$0xf]
        %v813 = vld [vmem:[%s809 + $0xc] sm:$0xf]
        %v814 = vld [vmem:[%s809 + $0x10] sm:$0xf]
        %v815 = vld [vmem:[%s809 + $0x14] sm:$0xf]
        %v816 = vld [vmem:[%s809 + $0x18] sm:$0xf]
        %v817 = vld [vmem:[%s809 + $0x1c] sm:$0xf]
        %v818 = vld [vmem:[%s809 + $0x20] sm:$0xf]
        %v819 = vld [vmem:[%s809 + $0x24] sm:$0xf]
        %v820 = vld [vmem:[%s809 + $0x28] sm:$0xf]
        %v821 = vld [vmem:[%s809 + $0x2c] sm:$0xf]
        %v822 = vld [vmem:[%s809 + $0x30] sm:$0xf]
        %v823 = vld [vmem:[%s809 + $0x34] sm:$0xf]
        %v824 = vld [vmem:[%s809 + $0x38] sm:$0xf]
        %v825 = vld [vmem:[%s809 + $0x3c] sm:$0xf]
        %v842 = vunpack.c.l.b16 %v810
        %v843 = vunpack.c.l.b16 %v811
        %v844 = vunpack.c.l.b16 %v812
        %v845 = vunpack.c.l.b16 %v813
        %v846 = vunpack.c.l.b16 %v814
        %v847 = vunpack.c.l.b16 %v815
        %v848 = vunpack.c.l.b16 %v816
        %v849 = vunpack.c.l.b16 %v817
        %v850 = vunpack.c.l.b16 %v818
        %v851 = vunpack.c.l.b16 %v819
        %v852 = vunpack.c.l.b16 %v820
        %v853 = vunpack.c.l.b16 %v821
        %v854 = vunpack.c.l.b16 %v822
        %v855 = vunpack.c.l.b16 %v823
        %v856 = vunpack.c.l.b16 %v824
        %v857 = vunpack.c.l.b16 %v825
        %v858 = vpack.c.b16 %v843, %v842
        %v859 = vpack.c.b16 %v845, %v844
        %v860 = vpack.c.b16 %v847, %v846
        %v861 = vpack.c.b16 %v849, %v848
        %v862 = vpack.c.b16 %v851, %v850
        %v863 = vpack.c.b16 %v853, %v852
        %v864 = vpack.c.b16 %v855, %v854
        %v865 = vpack.c.b16 %v857, %v856
        %874 = vmatprep.subr.bf16.mxu0 0
        %875 = vmatpush1.bf16.msra.mxu0 %v858
        %876 = vmatprep.subr.bf16.mxu0 0
        %877 = vmatpush1.bf16.msra.mxu0 %v859
        %878 = vmatprep.subr.bf16.mxu0 0
        %879 = vmatpush1.bf16.msra.mxu0 %v860
        %880 = vmatprep.subr.bf16.mxu0 0
        %881 = vmatpush1.bf16.msra.mxu0 %v861
        %882 = vmatprep.subr.bf16.mxu0 0
        %883 = vmatpush1.bf16.msra.mxu0 %v862
        %884 = vmatprep.subr.bf16.mxu0 0
        %885 = vmatpush1.bf16.msra.mxu0 %v863
        %886 = vmatprep.subr.bf16.mxu0 0
        %887 = vmatpush1.bf16.msra.mxu0 %v864
        %888 = vmatprep.subr.bf16.mxu0 0
        %889 = vmatpush1.bf16.msra.mxu0 %v865
        %890 = vmatprep.subr.bf16.mxu0 0
        %891 = vmatpush1.bf16.msra.mxu0 0
        %892 = vmatprep.subr.bf16.mxu0 0
        %893 = vmatpush1.bf16.msra.mxu0 0
        %894 = vmatprep.subr.bf16.mxu0 0
        %895 = vmatpush1.bf16.msra.mxu0 0
        %896 = vmatprep.subr.bf16.mxu0 0
        %897 = vmatpush1.bf16.msra.mxu0 0
        %898 = vmatprep.subr.bf16.mxu0 0
        %899 = vmatpush1.bf16.msra.mxu0 0
        %900 = vmatprep.subr.bf16.mxu0 0
        %901 = vmatpush1.bf16.msra.mxu0 0
        %902 = vmatprep.subr.bf16.mxu0 0
        %903 = vmatpush1.bf16.msra.mxu0 0
        %904 = vmatprep.subr.bf16.mxu0 0
        %905 = vmatpush1.bf16.msra.mxu0 0
        %906 = vmatprep.mubr.bf16.mxu0 0
        %907 = vmatmul.mubr.bf16.gmra.mrb[0].mxu0 %v805
        %v908 = vpop.f32.mrb[0].mxu0
        %v909 = vadd.f32 0.0, %v908
        %v910 = vpop.f32.mrb[0].mxu0
        %v911 = vpop.f32.mrb[0].mxu0
        %v912 = vadd.f32 0.0, %v911
        %v913 = vpop.f32.mrb[0].mxu0
        %914 = vmatprep.mubr.bf16.mxu0 0
        %915 = vmatmul.mubr.bf16.gmra.mrb[0].mxu0 %v806
        %v916 = vpop.f32.mrb[0].mxu0
        %v917 = vadd.f32 0.0, %v916
        %v918 = vpop.f32.mrb[0].mxu0
        %v919 = vpop.f32.mrb[0].mxu0
        %v920 = vadd.f32 0.0, %v919
        %v921 = vpop.f32.mrb[0].mxu0
        %922 = vmatprep.mubr.bf16.mxu0 0
        %923 = vmatmul.mubr.bf16.gmra.mrb[0].mxu0 %v807
        %v924 = vpop.f32.mrb[0].mxu0
        %v925 = vadd.f32 0.0, %v924
        %v926 = vpop.f32.mrb[0].mxu0
        %v927 = vpop.f32.mrb[0].mxu0
        %v928 = vadd.f32 0.0, %v927
        %v929 = vpop.f32.mrb[0].mxu0
        %930 = vmatprep.mubr.bf16.mxu0 0
        %931 = vmatmul.mubr.bf16.gmra.mrb[0].mxu0 %v808
        %v932 = vpop.f32.mrb[0].mxu0
        %v933 = vadd.f32 0.0, %v932
        %v934 = vpop.f32.mrb[0].mxu0
        %v935 = vpop.f32.mrb[0].mxu0
        %v936 = vadd.f32 0.0, %v935
        %v937 = vpop.f32.mrb[0].mxu0
        %938 = vdwg.mxu0
        %v955 = vunpack.c.l.b16 %v660
        %v956 = vunpack.c.l.b16 %v661
        %v957 = vunpack.c.l.b16 %v662
        %v958 = vunpack.c.l.b16 %v663
        %v959 = vunpack.c.l.b16 %v664
        %v960 = vunpack.c.l.b16 %v665
        %v961 = vunpack.c.l.b16 %v666
        %v962 = vunpack.c.l.b16 %v667
        %v963 = vunpack.c.l.b16 %v668
        %v964 = vunpack.c.l.b16 %v669
        %v965 = vunpack.c.l.b16 %v670
        %v966 = vunpack.c.l.b16 %v671
        %v967 = vunpack.c.l.b16 %v672
        %v968 = vunpack.c.l.b16 %v673
        %v969 = vunpack.c.l.b16 %v674
        %v970 = vunpack.c.l.b16 %v675
        %v971 = vpack.c.b16 %v956, %v955
        %v972 = vpack.c.b16 %v958, %v957
        %v973 = vpack.c.b16 %v960, %v959
        %v974 = vpack.c.b16 %v962, %v961
        %v975 = vpack.c.b16 %v964, %v963
        %v976 = vpack.c.b16 %v966, %v965
        %v977 = vpack.c.b16 %v968, %v967
        %v978 = vpack.c.b16 %v970, %v969
        %987 = vmatprep.subr.bf16.mxu0 0
        %988 = vmatpush1.bf16.msra.mxu0 %v971
        %989 = vmatprep.subr.bf16.mxu0 0
        %990 = vmatpush1.bf16.msra.mxu0 %v972
        %991 = vmatprep.subr.bf16.mxu0 0
        %992 = vmatpush1.bf16.msra.mxu0 %v973
        %993 = vmatprep.subr.bf16.mxu0 0
        %994 = vmatpush1.bf16.msra.mxu0 %v974
        %995 = vmatprep.subr.bf16.mxu0 0
        %996 = vmatpush1.bf16.msra.mxu0 %v975
        %997 = vmatprep.subr.bf16.mxu0 0
        %998 = vmatpush1.bf16.msra.mxu0 %v976
        %999 = vmatprep.subr.bf16.mxu0 0
        %1000 = vmatpush1.bf16.msra.mxu0 %v977
        %1001 = vmatprep.subr.bf16.mxu0 0
        %1002 = vmatpush1.bf16.msra.mxu0 %v978
        %1003 = vmatprep.subr.bf16.mxu0 0
        %1004 = vmatpush1.bf16.msra.mxu0 0
        %1005 = vmatprep.subr.bf16.mxu0 0
        %1006 = vmatpush1.bf16.msra.mxu0 0
        %1007 = vmatprep.subr.bf16.mxu0 0
        %1008 = vmatpush1.bf16.msra.mxu0 0
        %1009 = vmatprep.subr.bf16.mxu0 0
        %1010 = vmatpush1.bf16.msra.mxu0 0
        %1011 = vmatprep.subr.bf16.mxu0 0
        %1012 = vmatpush1.bf16.msra.mxu0 0
        %1013 = vmatprep.subr.bf16.mxu0 0
        %1014 = vmatpush1.bf16.msra.mxu0 0
        %1015 = vmatprep.subr.bf16.mxu0 0
        %1016 = vmatpush1.bf16.msra.mxu0 0
        %1017 = vmatprep.subr.bf16.mxu0 0
        %1018 = vmatpush1.bf16.msra.mxu0 0
        %1019 = vmatprep.mubr.bf16.mxu0 0
        %1020 = vmatmul.mubr.bf16.gmra.mrb[0].mxu0 %v656
        %v1021 = vpop.f32.mrb[0].mxu0
        %v1022 = vadd.f32 %v909, %v1021
        %v1023 = vpop.f32.mrb[0].mxu0
        %v1024 = vpop.f32.mrb[0].mxu0
        %v1025 = vadd.f32 %v912, %v1024
        %v1026 = vpop.f32.mrb[0].mxu0
        %1027 = vmatprep.mubr.bf16.mxu0 0
        %1028 = vmatmul.mubr.bf16.gmra.mrb[0].mxu0 %v657
        %v1029 = vpop.f32.mrb[0].mxu0
        %v1030 = vadd.f32 %v917, %v1029
        %v1031 = vpop.f32.mrb[0].mxu0
        %v1032 = vpop.f32.mrb[0].mxu0
        %v1033 = vadd.f32 %v920, %v1032
        %v1034 = vpop.f32.mrb[0].mxu0
        %1035 = vmatprep.mubr.bf16.mxu0 0
        %1036 = vmatmul.mubr.bf16.gmra.mrb[0].mxu0 %v658
        %v1037 = vpop.f32.mrb[0].mxu0
        %v1038 = vadd.f32 %v925, %v1037
        %v1039 = vpop.f32.mrb[0].mxu0
        %v1040 = vpop.f32.mrb[0].mxu0
        %v1041 = vadd.f32 %v928, %v1040
        %v1042 = vpop.f32.mrb[0].mxu0
        %1043 = vmatprep.mubr.bf16.mxu0 0
        %1044 = vmatmul.mubr.bf16.gmra.mrb[0].mxu0 %v659
        %v1045 = vpop.f32.mrb[0].mxu0
        %v1046 = vadd.f32 %v933, %v1045
        %v1047 = vpop.f32.mrb[0].mxu0
        %v1048 = vpop.f32.mrb[0].mxu0
        %v1049 = vadd.f32 %v936, %v1048
        %v1050 = vpop.f32.mrb[0].mxu0
        %1051 = vdwg.mxu0
        %s1052 = scalar_lea.vmem %s357, 64 [#allocation7]
        %v1053 = vld [vmem:[%s1052] sm:$0xf]
        %v1054 = vld [vmem:[%s1052 + $0x4] sm:$0xf]
        %v1055 = vld [vmem:[%s1052 + $0x8] sm:$0xf]
        %v1056 = vld [vmem:[%s1052 + $0xc] sm:$0xf]
        %v1057 = vld [vmem:[%s1052 + $0x10] sm:$0xf]
        %v1058 = vld [vmem:[%s1052 + $0x14] sm:$0xf]
        %v1059 = vld [vmem:[%s1052 + $0x18] sm:$0xf]
        %v1060 = vld [vmem:[%s1052 + $0x1c] sm:$0xf]
        %1062 = vset.pattern.permute.xlu0 0
        %1063 = vperm.xlu0 %1062, %v1053
        %v1064 = vpop.permute.xlu0 %1063
        %v1067 = vunpack.c.l.s4 839922192
        %v1068 = vunpack.c.0.s8 %v1067
        %v1069 = vlaneseq
        %v1070 = vshrl.u32 %v1069, 7
        %v1071 = vsub.s32 %v1068, %v1070
        %v1072 = vrot.slane %v1064, %v1071
        %1074 = vset.pattern.permute.xlu0 0
        %1075 = vperm.xlu0 %1074, %v1054
        %v1076 = vpop.permute.xlu0 %1075
        %v1079 = vunpack.c.l.s4 839922192
        %v1080 = vunpack.c.0.s8 %v1079
        %v1081 = vlaneseq
        %v1082 = vshrl.u32 %v1081, 7
        %v1083 = vsub.s32 %v1080, %v1082
        %v1084 = vrot.slane %v1076, %v1083
        %1086 = vset.pattern.permute.xlu0 0
        %1087 = vperm.xlu0 %1086, %v1055
        %v1088 = vpop.permute.xlu0 %1087
        %v1091 = vunpack.c.l.s4 839922192
        %v1092 = vunpack.c.0.s8 %v1091
        %v1093 = vlaneseq
        %v1094 = vshrl.u32 %v1093, 7
        %v1095 = vsub.s32 %v1092, %v1094
        %v1096 = vrot.slane %v1088, %v1095
        %1098 = vset.pattern.permute.xlu0 0
        %1099 = vperm.xlu0 %1098, %v1056
        %v1100 = vpop.permute.xlu0 %1099
        %v1103 = vunpack.c.l.s4 839922192
        %v1104 = vunpack.c.0.s8 %v1103
        %v1105 = vlaneseq
        %v1106 = vshrl.u32 %v1105, 7
        %v1107 = vsub.s32 %v1104, %v1106
        %v1108 = vrot.slane %v1100, %v1107
        %1110 = vset.pattern.permute.xlu0 0
        %1111 = vperm.xlu0 %1110, %v1057
        %v1112 = vpop.permute.xlu0 %1111
        %v1115 = vunpack.c.l.s4 839922192
        %v1116 = vunpack.c.0.s8 %v1115
        %v1117 = vlaneseq
        %v1118 = vshrl.u32 %v1117, 7
        %v1119 = vsub.s32 %v1116, %v1118
        %v1120 = vrot.slane %v1112, %v1119
        %1122 = vset.pattern.permute.xlu0 0
        %1123 = vperm.xlu0 %1122, %v1058
        %v1124 = vpop.permute.xlu0 %1123
        %v1127 = vunpack.c.l.s4 839922192
        %v1128 = vunpack.c.0.s8 %v1127
        %v1129 = vlaneseq
        %v1130 = vshrl.u32 %v1129, 7
        %v1131 = vsub.s32 %v1128, %v1130
        %v1132 = vrot.slane %v1124, %v1131
        %1134 = vset.pattern.permute.xlu0 0
        %1135 = vperm.xlu0 %1134, %v1059
        %v1136 = vpop.permute.xlu0 %1135
        %v1139 = vunpack.c.l.s4 839922192
        %v1140 = vunpack.c.0.s8 %v1139
        %v1141 = vlaneseq
        %v1142 = vshrl.u32 %v1141, 7
        %v1143 = vsub.s32 %v1140, %v1142
        %v1144 = vrot.slane %v1136, %v1143
        %1146 = vset.pattern.permute.xlu0 0
        %1147 = vperm.xlu0 %1146, %v1060
        %v1148 = vpop.permute.xlu0 %1147
        %v1151 = vunpack.c.l.s4 839922192
        %v1152 = vunpack.c.0.s8 %v1151
        %v1153 = vlaneseq
        %v1154 = vshrl.u32 %v1153, 7
        %v1155 = vsub.s32 %v1152, %v1154
        %v1156 = vrot.slane %v1148, %v1155
        %v1165 = vunpack.c.l.b16 %v1072
        %v1166 = vunpack.c.l.b16 %v1084
        %v1167 = vunpack.c.l.b16 %v1096
        %v1168 = vunpack.c.l.b16 %v1108
        %v1169 = vunpack.c.l.b16 %v1120
        %v1170 = vunpack.c.l.b16 %v1132
        %v1171 = vunpack.c.l.b16 %v1144
        %v1172 = vunpack.c.l.b16 %v1156
        %v1173 = vpack.c.b16 %v1166, %v1165
        %v1174 = vpack.c.b16 %v1168, %v1167
        %v1175 = vpack.c.b16 %v1170, %v1169
        %v1176 = vpack.c.b16 %v1172, %v1171
        %v1181 = vmul.bf16 %v524, %v1173
        %v1182 = vmul.bf16 %v525, %v1174
        %v1183 = vmul.bf16 %v526, %v1175
        %v1184 = vmul.bf16 %v527, %v1176
        %s1185 = scalar_lea.vmem %s3, 128
        %v1186 = vld [vmem:[%s1185] sm:$0xf]
        %v1187 = vld [vmem:[%s1185 + $0x4] sm:$0xf]
        %v1188 = vld [vmem:[%s1185 + $0x8] sm:$0xf]
        %v1189 = vld [vmem:[%s1185 + $0xc] sm:$0xf]
        %v1190 = vld [vmem:[%s1185 + $0x10] sm:$0xf]
        %v1191 = vld [vmem:[%s1185 + $0x14] sm:$0xf]
        %v1192 = vld [vmem:[%s1185 + $0x18] sm:$0xf]
        %v1193 = vld [vmem:[%s1185 + $0x1c] sm:$0xf]
        %v1194 = vld [vmem:[%s1185 + $0x20] sm:$0xf]
        %v1195 = vld [vmem:[%s1185 + $0x24] sm:$0xf]
        %v1196 = vld [vmem:[%s1185 + $0x28] sm:$0xf]
        %v1197 = vld [vmem:[%s1185 + $0x2c] sm:$0xf]
        %v1198 = vld [vmem:[%s1185 + $0x30] sm:$0xf]
        %v1199 = vld [vmem:[%s1185 + $0x34] sm:$0xf]
        %v1200 = vld [vmem:[%s1185 + $0x38] sm:$0xf]
        %v1201 = vld [vmem:[%s1185 + $0x3c] sm:$0xf]
        %v1218 = vunpack.c.l.b16 %v1186
        %v1219 = vunpack.c.l.b16 %v1187
        %v1220 = vunpack.c.l.b16 %v1188
        %v1221 = vunpack.c.l.b16 %v1189
        %v1222 = vunpack.c.l.b16 %v1190
        %v1223 = vunpack.c.l.b16 %v1191
        %v1224 = vunpack.c.l.b16 %v1192
        %v1225 = vunpack.c.l.b16 %v1193
        %v1226 = vunpack.c.l.b16 %v1194
        %v1227 = vunpack.c.l.b16 %v1195
        %v1228 = vunpack.c.l.b16 %v1196
        %v1229 = vunpack.c.l.b16 %v1197
        %v1230 = vunpack.c.l.b16 %v1198
        %v1231 = vunpack.c.l.b16 %v1199
        %v1232 = vunpack.c.l.b16 %v1200
        %v1233 = vunpack.c.l.b16 %v1201
        %v1234 = vpack.c.b16 %v1219, %v1218
        %v1235 = vpack.c.b16 %v1221, %v1220
        %v1236 = vpack.c.b16 %v1223, %v1222
        %v1237 = vpack.c.b16 %v1225, %v1224
        %v1238 = vpack.c.b16 %v1227, %v1226
        %v1239 = vpack.c.b16 %v1229, %v1228
        %v1240 = vpack.c.b16 %v1231, %v1230
        %v1241 = vpack.c.b16 %v1233, %v1232
        %1250 = vmatprep.subr.bf16.mxu0 0
        %1251 = vmatpush1.bf16.msra.mxu0 %v1234
        %1252 = vmatprep.subr.bf16.mxu0 0
        %1253 = vmatpush1.bf16.msra.mxu0 %v1235
        %1254 = vmatprep.subr.bf16.mxu0 0
        %1255 = vmatpush1.bf16.msra.mxu0 %v1236
        %1256 = vmatprep.subr.bf16.mxu0 0
        %1257 = vmatpush1.bf16.msra.mxu0 %v1237
        %1258 = vmatprep.subr.bf16.mxu0 0
        %1259 = vmatpush1.bf16.msra.mxu0 %v1238
        %1260 = vmatprep.subr.bf16.mxu0 0
        %1261 = vmatpush1.bf16.msra.mxu0 %v1239
        %1262 = vmatprep.subr.bf16.mxu0 0
        %1263 = vmatpush1.bf16.msra.mxu0 %v1240
        %1264 = vmatprep.subr.bf16.mxu0 0
        %1265 = vmatpush1.bf16.msra.mxu0 %v1241
        %1266 = vmatprep.subr.bf16.mxu0 0
        %1267 = vmatpush1.bf16.msra.mxu0 0
        %1268 = vmatprep.subr.bf16.mxu0 0
        %1269 = vmatpush1.bf16.msra.mxu0 0
        %1270 = vmatprep.subr.bf16.mxu0 0
        %1271 = vmatpush1.bf16.msra.mxu0 0
        %1272 = vmatprep.subr.bf16.mxu0 0
        %1273 = vmatpush1.bf16.msra.mxu0 0
        %1274 = vmatprep.subr.bf16.mxu0 0
        %1275 = vmatpush1.bf16.msra.mxu0 0
        %1276 = vmatprep.subr.bf16.mxu0 0
        %1277 = vmatpush1.bf16.msra.mxu0 0
        %1278 = vmatprep.subr.bf16.mxu0 0
        %1279 = vmatpush1.bf16.msra.mxu0 0
        %1280 = vmatprep.subr.bf16.mxu0 0
        %1281 = vmatpush1.bf16.msra.mxu0 0
        %1282 = vmatprep.mubr.bf16.mxu0 0
        %1283 = vmatmul.mubr.bf16.gmra.mrb[0].mxu0 %v1181
        %v1284 = vpop.f32.mrb[0].mxu0
        %v1285 = vadd.f32 0.0, %v1284
        %v1286 = vpop.f32.mrb[0].mxu0
        %v1287 = vpop.f32.mrb[0].mxu0
        %v1288 = vadd.f32 0.0, %v1287
        %v1289 = vpop.f32.mrb[0].mxu0
        %1290 = vmatprep.mubr.bf16.mxu0 0
        %1291 = vmatmul.mubr.bf16.gmra.mrb[0].mxu0 %v1182
        %v1292 = vpop.f32.mrb[0].mxu0
        %v1293 = vadd.f32 0.0, %v1292
        %v1294 = vpop.f32.mrb[0].mxu0
        %v1295 = vpop.f32.mrb[0].mxu0
        %v1296 = vadd.f32 0.0, %v1295
        %v1297 = vpop.f32.mrb[0].mxu0
        %1298 = vmatprep.mubr.bf16.mxu0 0
        %1299 = vmatmul.mubr.bf16.gmra.mrb[0].mxu0 %v1183
        %v1300 = vpop.f32.mrb[0].mxu0
        %v1301 = vadd.f32 0.0, %v1300
        %v1302 = vpop.f32.mrb[0].mxu0
        %v1303 = vpop.f32.mrb[0].mxu0
        %v1304 = vadd.f32 0.0, %v1303
        %v1305 = vpop.f32.mrb[0].mxu0
        %1306 = vmatprep.mubr.bf16.mxu0 0
        %1307 = vmatmul.mubr.bf16.gmra.mrb[0].mxu0 %v1184
        %v1308 = vpop.f32.mrb[0].mxu0
        %v1309 = vadd.f32 0.0, %v1308
        %v1310 = vpop.f32.mrb[0].mxu0
        %v1311 = vpop.f32.mrb[0].mxu0
        %v1312 = vadd.f32 0.0, %v1311
        %v1313 = vpop.f32.mrb[0].mxu0
        %1314 = vdwg.mxu0
        %v1315 = vadd.f32 %v1022, %v1285
        %v1316 = vadd.f32 %v1025, %v1288
        %v1317 = vadd.f32 %v1030, %v1293
        %v1318 = vadd.f32 %v1033, %v1296
        %v1319 = vadd.f32 %v1038, %v1301
        %v1320 = vadd.f32 %v1041, %v1304
        %v1321 = vadd.f32 %v1046, %v1309
        %v1322 = vadd.f32 %v1049, %v1312
        %1323 = vst [vmem:[%s384] sm:$0xff] %v1315
        %1324 = vst [vmem:[%s384 + $0x8] sm:$0xff] %v1316
        %1325 = vst [vmem:[%s384 + $0x10] sm:$0xff] %v1317
        %1326 = vst [vmem:[%s384 + $0x18] sm:$0xff] %v1318
        %1327 = vst [vmem:[%s384 + $0x20] sm:$0xff] %v1319
        %1328 = vst [vmem:[%s384 + $0x28] sm:$0xff] %v1320
        %1329 = vst [vmem:[%s384 + $0x30] sm:$0xff] %v1321
        %1330 = vst [vmem:[%s384 + $0x38] sm:$0xff] %v1322
        %s1331 = sand.u32 %s124, 1
        %s1332 = scalar_lea.sflag [#allocation4], %s1331
        %s1333 = sand.u32 %s124, 1
        %s1334 = smul.addr %s1333, 64
        %s1335 = scalar_lea.vmem [#allocation8], %s1334
        // Predicated region
        $region86: #{tpu_custom_call.1} parent=72 // pred_check
          %p1336 = pneg %p134
        $region87: #{tpu_custom_call.1} parent=72 // pred_check_branch
          %1338 = sbr.rel (%p1336) target = $region89
        $region88: #{tpu_custom_call.1} parent=72 // pred_region
          %s1339 = smul.u32 8, %s22
          %s1341 = ssub.s32 1024, 1024
          %1342 = vsyncadd %s1332, %s1341
          %s1343 = smul.addr %s1339, 128
          %s1344 = scalar_lea.hbm %s4, %s1343
          %s1345 = sshll.u32 %s1335, 4
          %s1346 = int_to_ptr.vmem [resolvable:$true] %s1345
          %1351 = dma.vmem_to_hbm [thread:$0]  %s1346, 1024, %s1344, %s1332, 128, 128, 8
        $region89: #{tpu_custom_call.1} parent=72 // pred_fallthru
          _
      $region73: #{tpu_custom_call.1} parent=5 // pred_fallthru
        _
      %p1352 = scmp.le.s32.totalorder 2, %s17
      // Predicated region
      $region90: #{tpu_custom_call.1} parent=5 // pred_check
        %p1353 = pneg %p1352
      $region91: #{tpu_custom_call.1} parent=5 // pred_check_branch
        %1355 = sbr.rel (%p1353) target = $region93
      $region92: #{tpu_custom_call.1} parent=5 // pred_region
        %s1356 = ssub.s32 %s17, 2
        // Predicated region
        $region94: #{tpu_custom_call.1} parent=92 // pred_check
          %p1357 = pneg %p140
        $region95: #{tpu_custom_call.1} parent=92 // pred_check_branch
          %1359 = sbr.rel (%p1357) target = $region97
        $region96: #{tpu_custom_call.1} parent=92 // pred_region
          %s1360 = sand.u32 %s125, 1
          %s1361 = scalar_lea.sflag [#allocation4], %s1360
          %s1362 = sand.u32 %s125, 1
          %s1363 = smul.addr %s1362, 64
          %s1364 = scalar_lea.vmem [#allocation8], %s1363
          %1365 = dma.done %s1361, 1024
        $region97: #{tpu_custom_call.1} parent=92 // pred_fallthru
          _
      $region93: #{tpu_custom_call.1} parent=5 // pred_fallthru
        _
    $region6: #{tpu_custom_call.1} parent=1 // loop_footer
      %s21 = sadd.s32 1, %s17
    $region7: #{tpu_custom_call.1} parent=1 // loop_footer_branch
      %16 = sbr.rel target = $region3
    $region8: #{tpu_custom_call.1} parent=1 // loop_exit
      _
    %1366 = vsyncpa [#allocation3], 1
    %s1367 = scalar_lea.sflag [#allocation3], 1
    %1368 = vsyncpa %s1367, 1
    %1369 = vsyncpa [#allocation6], 1
    %1370 = vsyncpa [#allocation4], 1
    %s1371 = scalar_lea.sflag [#allocation4], 1
    %1372 = vsyncpa %s1371, 1

</llo_original>
